<compile_context>
chip_gen: v5e
topology: v5e:2x2
jax: 0.10.0
libtpu: 0.0.40
codegen_flags: <defaults>
</compile_context>

<pallas_src>
import functools

import jax
import jax.numpy as jnp
from jax.experimental import pallas as pl
from jax.experimental.pallas import tpu as pltpu

EPS = 1e-5
LANE = 128   # pad every feature dim to one full lane width


def _deep_fused_kernel(x_ref, w_ref, o_ref, *, n_layers):
    """Fused [Linear -> BatchNorm1d(affine=False, batch stats) -> ReLU] x n_layers.

    x_ref: (B, LANE) f32 activations (features zero-padded to LANE lanes).
    w_ref: (n_layers, LANE, LANE) bf16; each layer's weight pre-transposed to
           (d_in, d_out) and zero-padded (padded rows/cols are exactly zero).
    o_ref: (B, LANE) f32 final activation (real features in the leading lanes).
    """
    x = x_ref[...]  # f32 (B, LANE)
    for l in range(n_layers):  # static unroll: n_layers is small & compile-time
        # Linear (bias omitted: cancelled exactly by the affine=False BatchNorm).
        # bf16 operands, f32 accumulation on the MXU.
        z = jnp.dot(x.astype(jnp.bfloat16), w_ref[l],
                    preferred_element_type=jnp.float32)
        # BatchNorm1d, training mode: batch mean / biased batch variance, in f32.
        mean = jnp.mean(z, axis=0, keepdims=True)
        centered = z - mean
        var = jnp.mean(centered * centered, axis=0, keepdims=True)
        z_norm = centered * jax.lax.rsqrt(var + EPS)
        # ReLU. Zero-padded lanes stay exactly zero: (0 - 0) * rsqrt(eps) = 0.
        x = jnp.maximum(z_norm, 0.0)
    o_ref[...] = x


def init_deep_params(key, input_dim, deep_layers):
    """nn.Linear-style uniform(-1/sqrt(fan_in)) init; weights stored (d_in, d_out)."""
    dims = [input_dim] + list(deep_layers)
    weights, biases = [], []
    for d_in, d_out in zip(dims[:-1], dims[1:]):
        key, kw, kb = jax.random.split(key, 3)
        bound = 1.0 / float(d_in) ** 0.5
        weights.append(jax.random.uniform(kw, (d_in, d_out), jnp.float32, -bound, bound))
        biases.append(jax.random.uniform(kb, (1, d_out), jnp.float32, -bound, bound))
    return weights, biases


def pack_weights(weights):
    """Stack per-layer (d_in, d_out) weights into one zero-padded bf16 tensor."""
    assert all(w.shape[0] <= LANE and w.shape[1] <= LANE for w in weights), (
        "this packing assumes every layer dim <= 128")
    # TODO(synk): layers wider than 128 lanes would need K/N tiling instead of padding.
    n = len(weights)
    w_stack = jnp.zeros((n, LANE, LANE), jnp.bfloat16)
    for l, w in enumerate(weights):
        d_in, d_out = w.shape
        w_stack = w_stack.at[l, :d_in, :d_out].set(w.astype(jnp.bfloat16))
    return w_stack


@functools.partial(jax.jit, static_argnames=("n_layers", "d_out_last"))
def deep_forward(x, w_stack, *, n_layers, d_out_last):
    b, d_in = x.shape
    # Pad input features to a full lane slab (cheap, done once outside the kernel).
    x_pad = jnp.zeros((b, LANE), jnp.float32).at[:, :d_in].set(x)
    out_pad = pl.pallas_call(
        functools.partial(_deep_fused_kernel, n_layers=n_layers),
        out_shape=jax.ShapeDtypeStruct((b, LANE), jnp.float32),
        in_specs=[
            pl.BlockSpec(memory_space=pltpu.MemorySpace.VMEM),
            pl.BlockSpec(memory_space=pltpu.MemorySpace.VMEM),
        ],
        out_specs=pl.BlockSpec(memory_space=pltpu.MemorySpace.VMEM),
    )(x_pad, w_stack)
    # Slice the real output lanes outside the kernel (keeps the store lane-dense).
    return out_pad[:, :d_out_last]
    # TODO(synk): for large batches, tile only the batch dim (grid over B with
    # dimension_semantics=("parallel",), v7x-aware tile sizes) and switch the
    # BatchNorm to a two-pass / resident-accumulator scheme so the statistics
    # remain full-batch instead of per-tile.


if __name__ == "__main__":
    key = jax.random.PRNGKey(0)

    batch = 8
    input_dim = 32
    deep_layers = [64, 32, 16]

    key, kx = jax.random.split(key)
    x = jax.random.normal(kx, (batch, input_dim), jnp.float32)

    weights, biases = init_deep_params(key, input_dim, deep_layers)
    w_stack = pack_weights(weights)

    out = deep_forward(x, w_stack, n_layers=len(deep_layers),
                       d_out_last=deep_layers[-1])
    jax.block_until_ready(out)

    # Pure-JAX reference of the exact module semantics (INCLUDING the Linear
    # bias, which the affine=False BatchNorm cancels) using the same bf16 weights.
    ref = x
    for w, bvec in zip(weights, biases):
        z = jnp.dot(ref.astype(jnp.bfloat16), w.astype(jnp.bfloat16),
                    preferred_element_type=jnp.float32) + bvec
        m = jnp.mean(z, axis=0, keepdims=True)
        c = z - m
        v = jnp.mean(c * c, axis=0, keepdims=True)
        ref = jnp.maximum(c * jax.lax.rsqrt(v + EPS), 0.0)

    assert out.shape == (batch, deep_layers[-1])
    # bf16 rounding of intermediate activations may diverge by ~1 ulp between the
    # fused-kernel path and the layer-by-layer reference; allow a small tolerance.
    assert jnp.allclose(out, ref, atol=1e-2, rtol=1e-2), (
        f"mismatch vs reference; max abs diff = {jnp.max(jnp.abs(out - ref))}")

    print("KERNEL_OK")
</pallas_src>

<mosaic_0001>
module attributes {stable_mosaic.version = 11 : i64} {
  func.func @_deep_fused_kernel(%arg0: memref<8x128xf32, #tpu.memory_space<vmem>>, %arg1: memref<3x128x128xbf16, #tpu.memory_space<vmem>>, %arg2: memref<8x128xf32, #tpu.memory_space<vmem>>) attributes {dimension_semantics = [], scalar_prefetch = 0 : i64, scratch_operands = 0 : i64, tpu.core_type = #tpu.core_type<tc>} {
    %c0 = arith.constant 0 : index
    %c0_0 = arith.constant 0 : index
    %0 = vector.load %arg0[%c0, %c0_0] : memref<8x128xf32, #tpu.memory_space<vmem>>, vector<8x128xf32>
    %1 = arith.truncf %0 : vector<8x128xf32> to vector<8x128xbf16>
    %c0_1 = arith.constant 0 : index
    %c0_2 = arith.constant 0 : index
    %c0_3 = arith.constant 0 : index
    %2 = vector.load %arg1[%c0_1, %c0_2, %c0_3] : memref<3x128x128xbf16, #tpu.memory_space<vmem>>, vector<1x128x128xbf16>
    %3 = vector.shape_cast %2 : vector<1x128x128xbf16> to vector<128x128xbf16>
    %cst = arith.constant dense<0.000000e+00> : vector<8x128xf32>
    %4 = tpu.matmul %1, %3, %cst {dimension_numbers = #tpu.dot_dimension_numbers<[1], [0], [0], [1], [0, 0, 1, 1], [], []>} : vector<8x128xbf16>, vector<128x128xbf16>, vector<8x128xf32> -> vector<8x128xf32>
    %cst_4 = arith.constant dense<0.000000e+00> : vector<128xf32>
    %5 = vector.multi_reduction <add>, %4, %cst_4 [0] : vector<8x128xf32> to vector<128xf32>
    %6 = vector.shape_cast %5 : vector<128xf32> to vector<1x128xf32>
    %cst_5 = arith.constant 8.000000e+00 : f32
    %7 = vector.broadcast %cst_5 : f32 to vector<1x128xf32>
    %8 = arith.divf %6, %7 : vector<1x128xf32>
    %9 = vector.broadcast %8 : vector<1x128xf32> to vector<8x128xf32>
    %10 = arith.subf %4, %9 : vector<8x128xf32>
    %11 = arith.mulf %10, %10 : vector<8x128xf32>
    %cst_6 = arith.constant dense<0.000000e+00> : vector<128xf32>
    %12 = vector.multi_reduction <add>, %11, %cst_6 [0] : vector<8x128xf32> to vector<128xf32>
    %13 = vector.shape_cast %12 : vector<128xf32> to vector<1x128xf32>
    %cst_7 = arith.constant 8.000000e+00 : f32
    %14 = vector.broadcast %cst_7 : f32 to vector<1x128xf32>
    %15 = arith.divf %13, %14 : vector<1x128xf32>
    %cst_8 = arith.constant 9.99999974E-6 : f32
    %16 = vector.broadcast %cst_8 : f32 to vector<1x128xf32>
    %17 = arith.addf %15, %16 : vector<1x128xf32>
    %18 = math.rsqrt %17 : vector<1x128xf32>
    %19 = vector.broadcast %18 : vector<1x128xf32> to vector<8x128xf32>
    %20 = arith.mulf %10, %19 : vector<8x128xf32>
    %cst_9 = arith.constant 0.000000e+00 : f32
    %21 = vector.broadcast %cst_9 : f32 to vector<8x128xf32>
    %22 = arith.maximumf %20, %21 : vector<8x128xf32>
    %23 = arith.truncf %22 : vector<8x128xf32> to vector<8x128xbf16>
    %c1 = arith.constant 1 : index
    %c0_10 = arith.constant 0 : index
    %c0_11 = arith.constant 0 : index
    %24 = vector.load %arg1[%c1, %c0_10, %c0_11] : memref<3x128x128xbf16, #tpu.memory_space<vmem>>, vector<1x128x128xbf16>
    %25 = vector.shape_cast %24 : vector<1x128x128xbf16> to vector<128x128xbf16>
    %cst_12 = arith.constant dense<0.000000e+00> : vector<8x128xf32>
    %26 = tpu.matmul %23, %25, %cst_12 {dimension_numbers = #tpu.dot_dimension_numbers<[1], [0], [0], [1], [0, 0, 1, 1], [], []>} : vector<8x128xbf16>, vector<128x128xbf16>, vector<8x128xf32> -> vector<8x128xf32>
    %cst_13 = arith.constant dense<0.000000e+00> : vector<128xf32>
    %27 = vector.multi_reduction <add>, %26, %cst_13 [0] : vector<8x128xf32> to vector<128xf32>
    %28 = vector.shape_cast %27 : vector<128xf32> to vector<1x128xf32>
    %cst_14 = arith.constant 8.000000e+00 : f32
    %29 = vector.broadcast %cst_14 : f32 to vector<1x128xf32>
    %30 = arith.divf %28, %29 : vector<1x128xf32>
    %31 = vector.broadcast %30 : vector<1x128xf32> to vector<8x128xf32>
    %32 = arith.subf %26, %31 : vector<8x128xf32>
    %33 = arith.mulf %32, %32 : vector<8x128xf32>
    %cst_15 = arith.constant dense<0.000000e+00> : vector<128xf32>
    %34 = vector.multi_reduction <add>, %33, %cst_15 [0] : vector<8x128xf32> to vector<128xf32>
    %35 = vector.shape_cast %34 : vector<128xf32> to vector<1x128xf32>
    %cst_16 = arith.constant 8.000000e+00 : f32
    %36 = vector.broadcast %cst_16 : f32 to vector<1x128xf32>
    %37 = arith.divf %35, %36 : vector<1x128xf32>
    %cst_17 = arith.constant 9.99999974E-6 : f32
    %38 = vector.broadcast %cst_17 : f32 to vector<1x128xf32>
    %39 = arith.addf %37, %38 : vector<1x128xf32>
    %40 = math.rsqrt %39 : vector<1x128xf32>
    %41 = vector.broadcast %40 : vector<1x128xf32> to vector<8x128xf32>
    %42 = arith.mulf %32, %41 : vector<8x128xf32>
    %cst_18 = arith.constant 0.000000e+00 : f32
    %43 = vector.broadcast %cst_18 : f32 to vector<8x128xf32>
    %44 = arith.maximumf %42, %43 : vector<8x128xf32>
    %45 = arith.truncf %44 : vector<8x128xf32> to vector<8x128xbf16>
    %c2 = arith.constant 2 : index
    %c0_19 = arith.constant 0 : index
    %c0_20 = arith.constant 0 : index
    %46 = vector.load %arg1[%c2, %c0_19, %c0_20] : memref<3x128x128xbf16, #tpu.memory_space<vmem>>, vector<1x128x128xbf16>
    %47 = vector.shape_cast %46 : vector<1x128x128xbf16> to vector<128x128xbf16>
    %cst_21 = arith.constant dense<0.000000e+00> : vector<8x128xf32>
    %48 = tpu.matmul %45, %47, %cst_21 {dimension_numbers = #tpu.dot_dimension_numbers<[1], [0], [0], [1], [0, 0, 1, 1], [], []>} : vector<8x128xbf16>, vector<128x128xbf16>, vector<8x128xf32> -> vector<8x128xf32>
    %cst_22 = arith.constant dense<0.000000e+00> : vector<128xf32>
    %49 = vector.multi_reduction <add>, %48, %cst_22 [0] : vector<8x128xf32> to vector<128xf32>
    %50 = vector.shape_cast %49 : vector<128xf32> to vector<1x128xf32>
    %cst_23 = arith.constant 8.000000e+00 : f32
    %51 = vector.broadcast %cst_23 : f32 to vector<1x128xf32>
    %52 = arith.divf %50, %51 : vector<1x128xf32>
    %53 = vector.broadcast %52 : vector<1x128xf32> to vector<8x128xf32>
    %54 = arith.subf %48, %53 : vector<8x128xf32>
    %55 = arith.mulf %54, %54 : vector<8x128xf32>
    %cst_24 = arith.constant dense<0.000000e+00> : vector<128xf32>
    %56 = vector.multi_reduction <add>, %55, %cst_24 [0] : vector<8x128xf32> to vector<128xf32>
    %57 = vector.shape_cast %56 : vector<128xf32> to vector<1x128xf32>
    %cst_25 = arith.constant 8.000000e+00 : f32
    %58 = vector.broadcast %cst_25 : f32 to vector<1x128xf32>
    %59 = arith.divf %57, %58 : vector<1x128xf32>
    %cst_26 = arith.constant 9.99999974E-6 : f32
    %60 = vector.broadcast %cst_26 : f32 to vector<1x128xf32>
    %61 = arith.addf %59, %60 : vector<1x128xf32>
    %62 = math.rsqrt %61 : vector<1x128xf32>
    %63 = vector.broadcast %62 : vector<1x128xf32> to vector<8x128xf32>
    %64 = arith.mulf %54, %63 : vector<8x128xf32>
    %cst_27 = arith.constant 0.000000e+00 : f32
    %65 = vector.broadcast %cst_27 : f32 to vector<8x128xf32>
    %66 = arith.maximumf %64, %65 : vector<8x128xf32>
    %c0_28 = arith.constant 0 : index
    %c0_29 = arith.constant 0 : index
    %67 = vector.load %arg2[%c0_28, %c0_29] : memref<8x128xf32, #tpu.memory_space<vmem>>, vector<8x128xf32>
    tpu.vector_store %arg2[%c0_28, %c0_29], %66 {strides = array<i32>} : memref<8x128xf32, #tpu.memory_space<vmem>>, vector<8x128xf32>,
    return
  }
}

</mosaic_0001>

<llo_original>
// kernel: deep_forward.1
$region0: #{deep_forward.1}
  #allocation0 [shape = 'u32[]', space=smem, size = 0x4, offset = 0x4, fixed_abs, tag = 'smem constant byte address 0x4 - core index']
  #allocation1 [shape = 'u32[72,128]{1,0:T(1,128)}', space=vmem, size = 0x9000, scoped, tag = 'internal scratch']
  %s0 = inlined_call_operand.vmem [shape: f32[8,128], index: 0, kind: input, shape index: {}]
  %s1 = inlined_call_operand.hbm [shape: bf16[3,128,128], index: 1, kind: input, shape index: {}]
  %s2 = inlined_call_operand.hbm [shape: f32[8,128], index: 2, kind: output, shape index: {}]
  %s3 = sld [smem:[#allocation0]]
  $region22: #{deep_forward.1} parent=0
    _
  %s5 = ssub.s32 1, %s3
  %s6 = scalar_select 0, %s5, %s3
  $region1: #{deep_forward.1} parent=0
    #allocation2 [shape = 'u8[98304]{0}', space=vmem, size = 0x18000, scoped, tag = 'input window, operand 1, single buffered']
    #allocation3 [shape = 's32[1]{0}', space=sflag, size = 0x4, scoped, tag = 'scoped memory for deep_forward.1']
    #allocation4 [shape = 's32[1]{0}', space=sflag, size = 0x4, scoped, tag = 'scoped memory for deep_forward.1']
    #allocation5 [shape = 'u8[4096]{0}', space=vmem, size = 0x1000, scoped, tag = 'output window, operand 0, single buffered']
    %7 = vsyncpa [#allocation3], 0
    %8 = vsyncpa [#allocation4], 0
    // Predicated region
    $region2: #{deep_forward.1} parent=1 // pred_check
      _
    $region3: #{deep_forward.1} parent=1 // pred_check_branch
      %10 = sbr.rel (0) target = $region5
    $region4: #{deep_forward.1} parent=1 // pred_region
      _
    $region5: #{deep_forward.1} parent=1 // pred_fallthru
      _
    // Predicated region
    $region6: #{deep_forward.1} parent=1 // pred_check
      _
    $region7: #{deep_forward.1} parent=1 // pred_check_branch
      %12 = sbr.rel (0) target = $region9
    $region8: #{deep_forward.1} parent=1 // pred_region
      %14 = vsyncadd [#allocation3], 0
      %s15 = sshll.u32 %s1, 4
      %s16 = int_to_ptr.hbm [resolvable:$true] %s15
      %s17 = sshll.u32 [#allocation2], 4
      %s18 = int_to_ptr.vmem [resolvable:$true] %s17
      %23 = dma.hbm_to_vmem [thread:$0]  %s16, 3072, %s18, [#allocation3], 64, 64, 4
    $region9: #{deep_forward.1} parent=1 // pred_fallthru
      _
    // Predicated region
    $region10: #{deep_forward.1} parent=1 // pred_check
      _
    $region11: #{deep_forward.1} parent=1 // pred_check_branch
      %25 = sbr.rel (0) target = $region13
    $region12: #{deep_forward.1} parent=1 // pred_region
      %27 = dma.done [#allocation3], 3072
    $region13: #{deep_forward.1} parent=1 // pred_fallthru
      _
    %v28 = vld [vmem:[%s0] sm:$0xff]
    %v29 = vpack.c.bf16 %v28, %v28
    %v30 = vld [vmem:[#allocation2] sm:$0xf]
    %v31 = vld [vmem:[#allocation2 + $0x4] sm:$0xf]
    %v32 = vld [vmem:[#allocation2 + $0x8] sm:$0xf]
    %v33 = vld [vmem:[#allocation2 + $0xc] sm:$0xf]
    %v34 = vld [vmem:[#allocation2 + $0x10] sm:$0xf]
    %v35 = vld [vmem:[#allocation2 + $0x14] sm:$0xf]
    %v36 = vld [vmem:[#allocation2 + $0x18] sm:$0xf]
    %v37 = vld [vmem:[#allocation2 + $0x1c] sm:$0xf]
    %v38 = vld [vmem:[#allocation2 + $0x20] sm:$0xf]
    %v39 = vld [vmem:[#allocation2 + $0x24] sm:$0xf]
    %v40 = vld [vmem:[#allocation2 + $0x28] sm:$0xf]
    %v41 = vld [vmem:[#allocation2 + $0x2c] sm:$0xf]
    %v42 = vld [vmem:[#allocation2 + $0x30] sm:$0xf]
    %v43 = vld [vmem:[#allocation2 + $0x34] sm:$0xf]
    %v44 = vld [vmem:[#allocation2 + $0x38] sm:$0xf]
    %v45 = vld [vmem:[#allocation2 + $0x3c] sm:$0xf]
    %v62 = vunpack.c.l.b16 %v30
    %v63 = vunpack.c.l.b16 %v31
    %v64 = vunpack.c.l.b16 %v32
    %v65 = vunpack.c.l.b16 %v33
    %v66 = vunpack.c.l.b16 %v34
    %v67 = vunpack.c.l.b16 %v35
    %v68 = vunpack.c.l.b16 %v36
    %v69 = vunpack.c.l.b16 %v37
    %v70 = vunpack.c.l.b16 %v38
    %v71 = vunpack.c.l.b16 %v39
    %v72 = vunpack.c.l.b16 %v40
    %v73 = vunpack.c.l.b16 %v41
    %v74 = vunpack.c.l.b16 %v42
    %v75 = vunpack.c.l.b16 %v43
    %v76 = vunpack.c.l.b16 %v44
    %v77 = vunpack.c.l.b16 %v45
    %v78 = vpack.c.b16 %v63, %v62
    %v79 = vpack.c.b16 %v65, %v64
    %v80 = vpack.c.b16 %v67, %v66
    %v81 = vpack.c.b16 %v69, %v68
    %v82 = vpack.c.b16 %v71, %v70
    %v83 = vpack.c.b16 %v73, %v72
    %v84 = vpack.c.b16 %v75, %v74
    %v85 = vpack.c.b16 %v77, %v76
    %94 = vmatpush.bf16.msra.mxu0 %v85
    %95 = vmatpush.bf16.msra.mxu0 %v84
    %96 = vmatpush.bf16.msra.mxu0 %v83
    %97 = vmatpush.bf16.msra.mxu0 %v82
    %98 = vmatpush.bf16.msra.mxu0 %v81
    %99 = vmatpush.bf16.msra.mxu0 %v80
    %100 = vmatpush.bf16.msra.mxu0 %v79
    %101 = vmatpush.bf16.msra.mxu0 %v78
    %102 = vmatmul.bf16.gmra.mxu0 %v29
    %v103 = vpop.f32.mrf.mxu0
    %v104 = vadd.f32 0.0, %v103
    %v105 = vpop.f32.mrf.mxu0
    %106 = vdwg.mxu0
    %v107 = vrot.slane %v104, 4
    %v108 = vadd.f32 %v104, %v107
    %v109 = vrot.slane %v108, 2
    %v110 = vadd.f32 %v108, %v109
    %v111 = vrot.slane %v110, 1
    %v112 = vadd.f32 %v110, %v111
    %v113 = vrcp.pop 8.0
    %v114 = vmul.f32 8.0, %v113
    %v115 = vsub.f32 1.0, %v114
    %v116 = vmul.f32 %v113, %v115
    %v117 = vadd.f32 %v113, %v116
    %vm118 = vweird.f32 %v113
    %v119 = vsel %vm118, %v113, %v117
    %v120 = vmul.f32 %v112, %v119
    %v121 = vsub.f32 %v104, %v120
    %v122 = vmul.f32 %v121, %v121
    %v123 = vrot.slane %v122, 4
    %v124 = vadd.f32 %v122, %v123
    %v125 = vrot.slane %v124, 2
    %v126 = vadd.f32 %v124, %v125
    %v127 = vrot.slane %v126, 1
    %v128 = vadd.f32 %v126, %v127
    %v129 = vmul.f32 %v128, %v119
    %v130 = vadd.f32 %v129, 1e-05
    %v131 = vrsqrt.pop %v130
    %v132 = vmul.f32 %v131, %v130
    %v133 = vmul.f32 %v132, %v131
    %v134 = vmul.f32 0.5, %v133
    %v135 = vsub.f32 1.5, %v134
    %v136 = vmul.f32 %v131, %v135
    %vm137 = vweird.f32 %v130
    %vm138 = vweird.f32 %v131
    %vm139 = vmor %vm137, %vm138
    %v140 = vsel %vm139, %v131, %v136
    %v141 = vmul.f32 %v121, %v140
    %v142 = vmax.f32 %v141, 0.0
    %v143 = vpack.c.bf16 %v142, %v142
    %s144 = scalar_lea.vmem [#allocation2], 64
    %v145 = vld [vmem:[%s144] sm:$0xf]
    %v146 = vld [vmem:[%s144 + $0x4] sm:$0xf]
    %v147 = vld [vmem:[%s144 + $0x8] sm:$0xf]
    %v148 = vld [vmem:[%s144 + $0xc] sm:$0xf]
    %v149 = vld [vmem:[%s144 + $0x10] sm:$0xf]
    %v150 = vld [vmem:[%s144 + $0x14] sm:$0xf]
    %v151 = vld [vmem:[%s144 + $0x18] sm:$0xf]
    %v152 = vld [vmem:[%s144 + $0x1c] sm:$0xf]
    %v153 = vld [vmem:[%s144 + $0x20] sm:$0xf]
    %v154 = vld [vmem:[%s144 + $0x24] sm:$0xf]
    %v155 = vld [vmem:[%s144 + $0x28] sm:$0xf]
    %v156 = vld [vmem:[%s144 + $0x2c] sm:$0xf]
    %v157 = vld [vmem:[%s144 + $0x30] sm:$0xf]
    %v158 = vld [vmem:[%s144 + $0x34] sm:$0xf]
    %v159 = vld [vmem:[%s144 + $0x38] sm:$0xf]
    %v160 = vld [vmem:[%s144 + $0x3c] sm:$0xf]
    %v177 = vunpack.c.l.b16 %v145
    %v178 = vunpack.c.l.b16 %v146
    %v179 = vunpack.c.l.b16 %v147
    %v180 = vunpack.c.l.b16 %v148
    %v181 = vunpack.c.l.b16 %v149
    %v182 = vunpack.c.l.b16 %v150
    %v183 = vunpack.c.l.b16 %v151
    %v184 = vunpack.c.l.b16 %v152
    %v185 = vunpack.c.l.b16 %v153
    %v186 = vunpack.c.l.b16 %v154
    %v187 = vunpack.c.l.b16 %v155
    %v188 = vunpack.c.l.b16 %v156
    %v189 = vunpack.c.l.b16 %v157
    %v190 = vunpack.c.l.b16 %v158
    %v191 = vunpack.c.l.b16 %v159
    %v192 = vunpack.c.l.b16 %v160
    %v193 = vpack.c.b16 %v178, %v177
    %v194 = vpack.c.b16 %v180, %v179
    %v195 = vpack.c.b16 %v182, %v181
    %v196 = vpack.c.b16 %v184, %v183
    %v197 = vpack.c.b16 %v186, %v185
    %v198 = vpack.c.b16 %v188, %v187
    %v199 = vpack.c.b16 %v190, %v189
    %v200 = vpack.c.b16 %v192, %v191
    %209 = vmatpush.bf16.msra.mxu0 %v200
    %210 = vmatpush.bf16.msra.mxu0 %v199
    %211 = vmatpush.bf16.msra.mxu0 %v198
    %212 = vmatpush.bf16.msra.mxu0 %v197
    %213 = vmatpush.bf16.msra.mxu0 %v196
    %214 = vmatpush.bf16.msra.mxu0 %v195
    %215 = vmatpush.bf16.msra.mxu0 %v194
    %216 = vmatpush.bf16.msra.mxu0 %v193
    %217 = vmatmul.bf16.gmra.mxu0 %v143
    %v218 = vpop.f32.mrf.mxu0
    %v219 = vadd.f32 0.0, %v218
    %v220 = vpop.f32.mrf.mxu0
    %221 = vdwg.mxu0
    %v222 = vrot.slane %v219, 4
    %v223 = vadd.f32 %v219, %v222
    %v224 = vrot.slane %v223, 2
    %v225 = vadd.f32 %v223, %v224
    %v226 = vrot.slane %v225, 1
    %v227 = vadd.f32 %v225, %v226
    %v228 = vmul.f32 %v227, %v119
    %v229 = vsub.f32 %v219, %v228
    %v230 = vmul.f32 %v229, %v229
    %v231 = vrot.slane %v230, 4
    %v232 = vadd.f32 %v230, %v231
    %v233 = vrot.slane %v232, 2
    %v234 = vadd.f32 %v232, %v233
    %v235 = vrot.slane %v234, 1
    %v236 = vadd.f32 %v234, %v235
    %v237 = vmul.f32 %v236, %v119
    %v238 = vadd.f32 %v237, 1e-05
    %v239 = vrsqrt.pop %v238
    %v240 = vmul.f32 %v239, %v238
    %v241 = vmul.f32 %v240, %v239
    %v242 = vmul.f32 0.5, %v241
    %v243 = vsub.f32 1.5, %v242
    %v244 = vmul.f32 %v239, %v243
    %vm245 = vweird.f32 %v238
    %vm246 = vweird.f32 %v239
    %vm247 = vmor %vm245, %vm246
    %v248 = vsel %vm247, %v239, %v244
    %v249 = vmul.f32 %v229, %v248
    %v250 = vmax.f32 %v249, 0.0
    %v251 = vpack.c.bf16 %v250, %v250
    %s252 = scalar_lea.vmem [#allocation2], 128
    %v253 = vld [vmem:[%s252] sm:$0xf]
    %v254 = vld [vmem:[%s252 + $0x4] sm:$0xf]
    %v255 = vld [vmem:[%s252 + $0x8] sm:$0xf]
    %v256 = vld [vmem:[%s252 + $0xc] sm:$0xf]
    %v257 = vld [vmem:[%s252 + $0x10] sm:$0xf]
    %v258 = vld [vmem:[%s252 + $0x14] sm:$0xf]
    %v259 = vld [vmem:[%s252 + $0x18] sm:$0xf]
    %v260 = vld [vmem:[%s252 + $0x1c] sm:$0xf]
    %v261 = vld [vmem:[%s252 + $0x20] sm:$0xf]
    %v262 = vld [vmem:[%s252 + $0x24] sm:$0xf]
    %v263 = vld [vmem:[%s252 + $0x28] sm:$0xf]
    %v264 = vld [vmem:[%s252 + $0x2c] sm:$0xf]
    %v265 = vld [vmem:[%s252 + $0x30] sm:$0xf]
    %v266 = vld [vmem:[%s252 + $0x34] sm:$0xf]
    %v267 = vld [vmem:[%s252 + $0x38] sm:$0xf]
    %v268 = vld [vmem:[%s252 + $0x3c] sm:$0xf]
    %v285 = vunpack.c.l.b16 %v253
    %v286 = vunpack.c.l.b16 %v254
    %v287 = vunpack.c.l.b16 %v255
    %v288 = vunpack.c.l.b16 %v256
    %v289 = vunpack.c.l.b16 %v257
    %v290 = vunpack.c.l.b16 %v258
    %v291 = vunpack.c.l.b16 %v259
    %v292 = vunpack.c.l.b16 %v260
    %v293 = vunpack.c.l.b16 %v261
    %v294 = vunpack.c.l.b16 %v262
    %v295 = vunpack.c.l.b16 %v263
    %v296 = vunpack.c.l.b16 %v264
    %v297 = vunpack.c.l.b16 %v265
    %v298 = vunpack.c.l.b16 %v266
    %v299 = vunpack.c.l.b16 %v267
    %v300 = vunpack.c.l.b16 %v268
    %v301 = vpack.c.b16 %v286, %v285
    %v302 = vpack.c.b16 %v288, %v287
    %v303 = vpack.c.b16 %v290, %v289
    %v304 = vpack.c.b16 %v292, %v291
    %v305 = vpack.c.b16 %v294, %v293
    %v306 = vpack.c.b16 %v296, %v295
    %v307 = vpack.c.b16 %v298, %v297
    %v308 = vpack.c.b16 %v300, %v299
    %317 = vmatpush.bf16.msra.mxu0 %v308
    %318 = vmatpush.bf16.msra.mxu0 %v307
    %319 = vmatpush.bf16.msra.mxu0 %v306
    %320 = vmatpush.bf16.msra.mxu0 %v305
    %321 = vmatpush.bf16.msra.mxu0 %v304
    %322 = vmatpush.bf16.msra.mxu0 %v303
    %323 = vmatpush.bf16.msra.mxu0 %v302
    %324 = vmatpush.bf16.msra.mxu0 %v301
    %325 = vmatmul.bf16.gmra.mxu0 %v251
    %v326 = vpop.f32.mrf.mxu0
    %v327 = vadd.f32 0.0, %v326
    %v328 = vpop.f32.mrf.mxu0
    %329 = vdwg.mxu0
    %v330 = vrot.slane %v327, 4
    %v331 = vadd.f32 %v327, %v330
    %v332 = vrot.slane %v331, 2
    %v333 = vadd.f32 %v331, %v332
    %v334 = vrot.slane %v333, 1
    %v335 = vadd.f32 %v333, %v334
    %v336 = vmul.f32 %v335, %v119
    %v337 = vsub.f32 %v327, %v336
    %v338 = vmul.f32 %v337, %v337
    %v339 = vrot.slane %v338, 4
    %v340 = vadd.f32 %v338, %v339
    %v341 = vrot.slane %v340, 2
    %v342 = vadd.f32 %v340, %v341
    %v343 = vrot.slane %v342, 1
    %v344 = vadd.f32 %v342, %v343
    %v345 = vmul.f32 %v344, %v119
    %v346 = vadd.f32 %v345, 1e-05
    %v347 = vrsqrt.pop %v346
    %v348 = vmul.f32 %v347, %v346
    %v349 = vmul.f32 %v348, %v347
    %v350 = vmul.f32 0.5, %v349
    %v351 = vsub.f32 1.5, %v350
    %v352 = vmul.f32 %v347, %v351
    %vm353 = vweird.f32 %v346
    %vm354 = vweird.f32 %v347
    %vm355 = vmor %vm353, %vm354
    %v356 = vsel %vm355, %v347, %v352
    %v357 = vmul.f32 %v337, %v356
    %v358 = vmax.f32 %v357, 0.0
    %359 = vst [vmem:[#allocation5] sm:$0xff] %v358
    // Predicated region
    $region14: #{deep_forward.1} parent=1 // pred_check
      _
    $region15: #{deep_forward.1} parent=1 // pred_check_branch
      %361 = sbr.rel (0) target = $region17
    $region16: #{deep_forward.1} parent=1 // pred_region
      %363 = vsyncadd [#allocation4], 0
      %s365 = sshll.u32 [#allocation5], 4
      %s366 = int_to_ptr.vmem [resolvable:$true] %s365
      %s367 = sshll.u32 %s2, 4
      %s368 = int_to_ptr.hbm [resolvable:$true] %s367
      %370 = dma.vmem_to_hbm [thread:$0]  %s366, 128, %s368, [#allocation4]
    $region17: #{deep_forward.1} parent=1 // pred_fallthru
      _
    // Predicated region
    $region18: #{deep_forward.1} parent=1 // pred_check
      _
    $region19: #{deep_forward.1} parent=1 // pred_check_branch
      %372 = sbr.rel (0) target = $region21
    $region20: #{deep_forward.1} parent=1 // pred_region
      %374 = dma.done [#allocation4], 128
    $region21: #{deep_forward.1} parent=1 // pred_fallthru
      _
    %375 = vsyncpa [#allocation3], 1
    %376 = vsyncpa [#allocation4], 1

</llo_original>
